<compile_context>
chip_gen: v5e
topology: v5e:2x2
jax: 0.10.0
libtpu: 0.0.40
codegen_flags: <defaults>
</compile_context>

<pallas_src>
import functools
import math

import jax
import jax.numpy as jnp
import numpy as np
from jax.experimental import pallas as pl
from jax.experimental.pallas import tpu as pltpu


# ---------------------------------------------------------------------------
# Fused kernel: q/k/v projection + online-softmax attention + fc_out
# ---------------------------------------------------------------------------
def fused_attention_kernel(q_ref, k_ref, v_ref, wqkv_ref, wo_ref, b_ref,  # in
                           o_ref,                                          # out
                           qp_ref, m_ref, l_ref, acc_ref,                  # scratch
                           *, heads, head_dim, scale, compute_dtype,
                           per_head_proj):
    nb, lq, emb = q_ref.shape
    tk = k_ref.shape[1]
    hd = head_dim
    cdt = compute_dtype
    k_idx = pl.program_id(1)
    nk = pl.num_programs(1)

    # K / V projection weights (hoisted: loaded once per grid step).
    wk_w = wqkv_ref[1].astype(cdt)
    wv_w = wqkv_ref[2].astype(cdt)

    # -- first K tile for this batch block: project Q once, init m/l/acc -----
    @pl.when(k_idx == 0)
    def _init():
        m_ref[...] = jnp.full(m_ref.shape, -jnp.inf, dtype=m_ref.dtype)
        l_ref[...] = jnp.zeros(l_ref.shape, dtype=l_ref.dtype)
        acc_ref[...] = jnp.zeros(acc_ref.shape, dtype=acc_ref.dtype)

        wq_w = wqkv_ref[0].astype(cdt)
        q2d = q_ref[...].reshape(nb * lq, emb).astype(cdt)
        if per_head_proj:
            # hd >= 128: per-head (hd, hd) projection, no heads x inflation.
            for h in range(heads):
                sl = slice(h * hd, (h + 1) * hd)
                qp = jnp.dot(q2d[:, sl], wq_w,
                             preferred_element_type=jnp.float32)
                qp_ref[:, :, sl] = (qp * scale).reshape(nb, lq, hd).astype(
                    qp_ref.dtype)
        else:
            # hd < 128: single block-diagonal (E, E) matmul (best MXU fill).
            qp = jnp.dot(q2d, wq_w, preferred_element_type=jnp.float32)
            # Fold the 1/sqrt(embed_size) scale into Q (cheaper than scaling s).
            qp_ref[...] = (qp * scale).reshape(nb, lq, emb).astype(qp_ref.dtype)

    # -- project this K/V tile (cast to compute dtype exactly once) ----------
    k2d = k_ref[...].reshape(nb * tk, emb).astype(cdt)
    v2d = v_ref[...].reshape(nb * tk, emb).astype(cdt)
    if not per_head_proj:
        kp = jnp.dot(k2d, wk_w, preferred_element_type=jnp.float32
                     ).astype(cdt).reshape(nb, tk, emb)
        vp = jnp.dot(v2d, wv_w, preferred_element_type=jnp.float32
                     ).astype(cdt).reshape(nb, tk, emb)

    # -- per-head online-softmax update (static small-head unroll) -----------
    # Per-head results are written back to VMEM scratch at the end of each
    # iteration, so live ranges do not stack up across heads.
    for h in range(heads):
        sl = slice(h * hd, (h + 1) * hd)
        qh = qp_ref[:, :, sl]                                  # (nb, lq, hd)
        if per_head_proj:
            kh = jnp.dot(k2d[:, sl], wk_w, preferred_element_type=jnp.float32
                         ).astype(cdt).reshape(nb, tk, hd)
            vh = jnp.dot(v2d[:, sl], wv_w, preferred_element_type=jnp.float32
                         ).astype(cdt).reshape(nb, tk, hd)
        else:
            kh = kp[:, :, sl]
            vh = vp[:, :, sl]

        # Energy tile (nb, lq, tk), f32 accumulation on the MXU.
        s = jnp.einsum("nqd,nkd->nqk", qh, kh,
                       preferred_element_type=jnp.float32)

        m_prev = m_ref[:, :, h:h + 1]
        l_prev = l_ref[:, :, h:h + 1]
        m_new = jnp.maximum(m_prev, jnp.max(s, axis=-1, keepdims=True))
        alpha = jnp.exp(m_prev - m_new)                        # rescale factor
        p = jnp.exp(s - m_new)                                 # f32 softmax
        l_ref[:, :, h:h + 1] = alpha * l_prev + jnp.sum(p, axis=-1,
                                                        keepdims=True)
        m_ref[:, :, h:h + 1] = m_new

        pv = jnp.einsum("nqk,nkd->nqd", p.astype(cdt), vh,
                        preferred_element_type=jnp.float32)
        acc_ref[:, :, sl] = alpha * acc_ref[:, :, sl] + pv

    # -- last K tile: normalize, merge heads (already lane-dense), fc_out ----
    @pl.when(k_idx == nk - 1)
    def _finalize():
        # Normalize AFTER the PV matmul: Lq*hd multiplies per head, not Lq*Lk.
        inv = pl.reciprocal(l_ref[...], approx=True)           # EUP slot
        for h in range(heads):
            sl = slice(h * hd, (h + 1) * hd)
            acc_ref[:, :, sl] = acc_ref[:, :, sl] * inv[:, :, h:h + 1]

        ctx = acc_ref[...].reshape(nb * lq, emb).astype(cdt)
        out2 = jnp.dot(ctx, wo_ref[...].astype(cdt),
                       preferred_element_type=jnp.float32)
        out2 = out2 + b_ref[...].astype(jnp.float32)
        o_ref[...] = out2.reshape(nb, lq, emb).astype(o_ref.dtype)


# ---------------------------------------------------------------------------
# Host-side weight preparation (one-time layout transform)
# ---------------------------------------------------------------------------
def prepare_params(params, heads):
    hd = params["wq"].shape[0]
    emb = params["w_out"].shape[0]
    per_head_proj = hd >= 128          # avoid heads x FLOP/DMA inflation

    if per_head_proj:
        w_qkv = jnp.stack([params["wq"].T, params["wk"].T, params["wv"].T])
    else:
        def block_diag_t(w):           # (hd, hd) Linear weight -> (E, E) of W.T
            return jax.scipy.linalg.block_diag(*([w.T] * heads))
        w_qkv = jnp.stack([block_diag_t(params["wq"]),
                           block_diag_t(params["wk"]),
                           block_diag_t(params["wv"])])

    return {
        "w_qkv": w_qkv,                            # (3,E,E) or (3,hd,hd)
        "w_out_t": params["w_out"].T,              # (E, E), pre-transposed
        "b_out": params["b_out"].reshape(1, emb),  # (1, E)
        "per_head_proj": per_head_proj,
    }


# ---------------------------------------------------------------------------
# VMEM-budget-aware tile selection (sized for v7x, the tightest generation)
# ---------------------------------------------------------------------------
_VMEM_BUDGET = 30 * 1024 * 1024


def _round_up(x, m):
    return ((x + m - 1) // m) * m


def _choose_tiles(N, Lq, Lk, E, heads, w_qkv_elems, in_bytes, out_bytes,
                  budget=_VMEM_BUDGET):
    # K-axis tile: full tile for short sequences; otherwise the largest
    # multiple-of-8 divisor of Lk that is <= 512 (keeps the 256x256 MXUs of
    # v6e/v7x reasonably fed while leaving several K steps to overlap DMA).
    if Lk <= 512:
        tk = Lk
    else:
        divs = [d for d in range(8, Lk + 1, 8) if Lk % d == 0]
        good = [d for d in divs if d <= 512]
        tk = max(good) if good else (min(divs) if divs else Lk)

    def est(nb):
        stream = 2 * nb * Lq * E * in_bytes            # q block (double-buffered)
        stream += 2 * 2 * nb * tk * E * in_bytes       # k + v blocks
        stream += 2 * nb * Lq * E * out_bytes          # output block
        weights = 2 * (w_qkv_elems + E * E + E) * max(in_bytes, 2)
        scratch = nb * Lq * E * (in_bytes + 4)         # qp (cdt) + acc (f32)
        scratch += 2 * nb * Lq * _round_up(heads, 128) * 4   # m + l (lane pad)
        temp = 3 * nb * Lq * tk * 4                    # energy / p temporaries
        temp += 2 * nb * tk * E * 4                    # projected K/V tile
        return stream + weights + scratch + temp

    # Largest batch block that divides N and fits the budget (biggest block
    # that fits beats targeting MXU rows: per-grid-step overhead ~0.35 us).
    nb = 1
    for cand in range(N, 0, -1):
        if N % cand == 0 and est(cand) <= budget:
            nb = cand
            break
    return nb, tk, est(nb)


# ---------------------------------------------------------------------------
# Host-side wrapper
# ---------------------------------------------------------------------------
def self_attention_forward(values, keys, query, prepared, heads,
                           compute_dtype=jnp.float32, out_dtype=None):
    N, Lv, E = values.shape
    Lk = keys.shape[1]
    Lq = query.shape[1]
    assert Lk == Lv, "key_len must equal value_len (same assumption as module)"
    assert E % heads == 0
    hd = E // heads
    # PyTorch module scales by 1/sqrt(embed_size) (NOT 1/sqrt(head_dim)).
    scale = 1.0 / math.sqrt(E)

    if out_dtype is None:
        out_dtype = query.dtype
    cdt = compute_dtype

    # In bf16 mode, cast activations/weights on the host once: halves the
    # HBM->VMEM DMA bytes.  (For closer parity keep inputs f32 and only cast
    # MXU operands in-kernel; accumulation and softmax stay f32 regardless.)
    q_in = query.astype(cdt)
    k_in = keys.astype(cdt)
    v_in = values.astype(cdt)
    w_qkv = prepared["w_qkv"].astype(cdt)
    w_out_t = prepared["w_out_t"].astype(cdt)
    b_out = prepared["b_out"].astype(jnp.float32)

    in_bytes = jnp.dtype(cdt).itemsize
    out_bytes = jnp.dtype(out_dtype).itemsize
    nb, tk, est = _choose_tiles(N, Lq, Lk, E, heads, int(w_qkv.size),
                                in_bytes, out_bytes)
    vmem_limit = int(min(max(est * 1.25, 32 * 1024 * 1024), 64 * 1024 * 1024))

    kernel = functools.partial(
        fused_attention_kernel, heads=heads, head_dim=hd, scale=scale,
        compute_dtype=cdt, per_head_proj=prepared["per_head_proj"])

    return pl.pallas_call(
        kernel,
        out_shape=jax.ShapeDtypeStruct((N, Lq, E), out_dtype),
        grid_spec=pltpu.PrefetchScalarGridSpec(
            num_scalar_prefetch=0,
            grid=(N // nb, Lk // tk),
            in_specs=[
                pl.BlockSpec((nb, Lq, E), lambda i, k: (i, 0, 0)),  # query
                pl.BlockSpec((nb, tk, E), lambda i, k: (i, k, 0)),  # keys
                pl.BlockSpec((nb, tk, E), lambda i, k: (i, k, 0)),  # values
                pl.BlockSpec(w_qkv.shape, lambda i, k: (0, 0, 0)),  # w_qkv
                pl.BlockSpec((E, E), lambda i, k: (0, 0)),          # w_out^T
                pl.BlockSpec((1, E), lambda i, k: (0, 0)),          # bias
            ],
            out_specs=pl.BlockSpec((nb, Lq, E), lambda i, k: (i, 0, 0)),
            scratch_shapes=[
                pltpu.VMEM((nb, Lq, E), cdt),            # projected & scaled Q
                pltpu.VMEM((nb, Lq, heads), jnp.float32),  # running max m
                pltpu.VMEM((nb, Lq, heads), jnp.float32),  # running sum l
                pltpu.VMEM((nb, Lq, E), jnp.float32),      # unnormalized ctx
            ],
        ),
        compiler_params=pltpu.CompilerParams(
            dimension_semantics=("parallel", "arbitrary"),
            vmem_limit_bytes=vmem_limit,
        ),
    )(q_in, k_in, v_in, w_qkv, w_out_t, b_out)


# ---------------------------------------------------------------------------
# Pure-JAX reference (mirrors the PyTorch forward exactly)
# ---------------------------------------------------------------------------
def self_attention_reference(values, keys, query, params, heads):
    N, _, E = query.shape
    hd = E // heads
    v = values.reshape(N, -1, heads, hd) @ params["wv"].T
    k = keys.reshape(N, -1, heads, hd) @ params["wk"].T
    q = query.reshape(N, -1, heads, hd) @ params["wq"].T
    energy = jnp.einsum("nqhd,nkhd->nhqk", q, k)
    attn = jax.nn.softmax(energy / jnp.sqrt(jnp.float32(E)), axis=3)
    out = jnp.einsum("nhql,nlhd->nqhd", attn, v).reshape(N, -1, E)
    return out @ params["w_out"].T + params["b_out"]


# ---------------------------------------------------------------------------
# Deterministic parameter init (PyTorch-style uniform bounds, synthetic)
# ---------------------------------------------------------------------------
def init_params(key, embed_size, heads):
    hd = embed_size // heads
    k = jax.random.split(key, 5)
    bound_hd = 1.0 / math.sqrt(hd)
    bound_e = 1.0 / math.sqrt(embed_size)
    return {
        "wq": jax.random.uniform(k[0], (hd, hd), jnp.float32, -bound_hd, bound_hd),
        "wk": jax.random.uniform(k[1], (hd, hd), jnp.float32, -bound_hd, bound_hd),
        "wv": jax.random.uniform(k[2], (hd, hd), jnp.float32, -bound_hd, bound_hd),
        "w_out": jax.random.uniform(
            k[3], (embed_size, embed_size), jnp.float32, -bound_e, bound_e),
        "b_out": jax.random.uniform(
            k[4], (embed_size,), jnp.float32, -bound_e, bound_e),
    }


if __name__ == "__main__":
    N = 2          # batch
    SEQ = 8        # value_len == key_len == query_len
    EMBED = 32     # embed_size
    HEADS = 2      # heads -> head_dim = 16

    root = jax.random.PRNGKey(0)
    kp_, kv_, kk_, kq_ = jax.random.split(root, 4)
    params = init_params(kp_, EMBED, HEADS)
    prepared = prepare_params(params, HEADS)

    values = jax.random.normal(kv_, (N, SEQ, EMBED), jnp.float32)
    keys = jax.random.normal(kk_, (N, SEQ, EMBED), jnp.float32)
    query = jax.random.normal(kq_, (N, SEQ, EMBED), jnp.float32)

    ref = self_attention_reference(values, keys, query, params, HEADS)

    # f32 path: matches the PyTorch module (approx reciprocal is the only delta).
    out_f32 = jax.block_until_ready(
        self_attention_forward(values, keys, query, prepared, HEADS,
                               compute_dtype=jnp.float32))
    np.testing.assert_allclose(np.asarray(out_f32), np.asarray(ref),
                               rtol=1e-2, atol=1e-2)

    # bf16 MXU path (f32 accumulation + f32 softmax), bf16 output writeback.
    out_bf16 = jax.block_until_ready(
        self_attention_forward(values, keys, query, prepared, HEADS,
                               compute_dtype=jnp.bfloat16,
                               out_dtype=jnp.bfloat16))
    np.testing.assert_allclose(np.asarray(out_bf16, dtype=np.float32),
                               np.asarray(ref), rtol=5e-2, atol=5e-2)

    print("KERNEL_OK")
</pallas_src>

<mosaic_0001>
module attributes {stable_mosaic.version = 11 : i64} {
  func.func @fused_attention_kernel(%arg0: i32, %arg1: i32, %arg2: memref<2x8x32xf32, #tpu.memory_space<vmem>>, %arg3: memref<2x8x32xf32, #tpu.memory_space<vmem>>, %arg4: memref<2x8x32xf32, #tpu.memory_space<vmem>>, %arg5: memref<3x32x32xf32, #tpu.memory_space<vmem>>, %arg6: memref<32x32xf32, #tpu.memory_space<vmem>>, %arg7: memref<1x32xf32, #tpu.memory_space<vmem>>, %arg8: memref<2x8x32xf32, #tpu.memory_space<vmem>>, %arg9: memref<2x8x32xf32, #tpu.memory_space<vmem>>, %arg10: memref<2x8x2xf32, #tpu.memory_space<vmem>>, %arg11: memref<2x8x2xf32, #tpu.memory_space<vmem>>, %arg12: memref<2x8x32xf32, #tpu.memory_space<vmem>>) attributes {dimension_semantics = [#tpu.dimension_semantics<parallel>, #tpu.dimension_semantics<arbitrary>], iteration_bounds = array<i64: 1, 1>, scalar_prefetch = 0 : i64, scratch_operands = 4 : i64, tpu.core_type = #tpu.core_type<tc>, window_params = [{transform_indices = @transform_0, window_bounds = array<i64: 2, 8, 32>}, {transform_indices = @transform_1, window_bounds = array<i64: 2, 8, 32>}, {transform_indices = @transform_2, window_bounds = array<i64: 2, 8, 32>}, {pipeline_mode = #tpu.pipeline_mode<synchronous>, transform_indices = @transform_3, window_bounds = array<i64: 3, 32, 32>}, {pipeline_mode = #tpu.pipeline_mode<synchronous>, transform_indices = @transform_4, window_bounds = array<i64: 32, 32>}, {pipeline_mode = #tpu.pipeline_mode<synchronous>, transform_indices = @transform_5, window_bounds = array<i64: 1, 32>}, {transform_indices = @transform_6, window_bounds = array<i64: 2, 8, 32>}]} {
    %c1 = arith.constant 1 : index
    %c0 = arith.constant 0 : index
    %c0_0 = arith.constant 0 : index
    %0 = vector.load %arg5[%c1, %c0, %c0_0] : memref<3x32x32xf32, #tpu.memory_space<vmem>>, vector<1x32x32xf32>
    %1 = vector.shape_cast %0 : vector<1x32x32xf32> to vector<32x32xf32>
    %c2 = arith.constant 2 : index
    %c0_1 = arith.constant 0 : index
    %c0_2 = arith.constant 0 : index
    %2 = vector.load %arg5[%c2, %c0_1, %c0_2] : memref<3x32x32xf32, #tpu.memory_space<vmem>>, vector<1x32x32xf32>
    %3 = vector.shape_cast %2 : vector<1x32x32xf32> to vector<32x32xf32>
    %c0_i32 = arith.constant 0 : i32
    %4 = arith.cmpi eq, %arg1, %c0_i32 : i32
    %5 = arith.extui %4 : i1 to i32
    %c0_i32_3 = arith.constant 0 : i32
    %6 = arith.cmpi ne, %5, %c0_i32_3 : i32
    scf.if %6 {
      %cst_62 = arith.constant 0xFF800000 : f32
      %70 = vector.broadcast %cst_62 : f32 to vector<2x8x2xf32>
      %c0_63 = arith.constant 0 : index
      %c0_64 = arith.constant 0 : index
      %c0_65 = arith.constant 0 : index
      %71 = vector.load %arg10[%c0_63, %c0_64, %c0_65] : memref<2x8x2xf32, #tpu.memory_space<vmem>>, vector<2x8x2xf32>
      tpu.vector_store %arg10[%c0_63, %c0_64, %c0_65], %70 {strides = array<i32>} : memref<2x8x2xf32, #tpu.memory_space<vmem>>, vector<2x8x2xf32>,
      %cst_66 = arith.constant 0.000000e+00 : f32
      %72 = vector.broadcast %cst_66 : f32 to vector<2x8x2xf32>
      %c0_67 = arith.constant 0 : index
      %c0_68 = arith.constant 0 : index
      %c0_69 = arith.constant 0 : index
      %73 = vector.load %arg11[%c0_67, %c0_68, %c0_69] : memref<2x8x2xf32, #tpu.memory_space<vmem>>, vector<2x8x2xf32>
      tpu.vector_store %arg11[%c0_67, %c0_68, %c0_69], %72 {strides = array<i32>} : memref<2x8x2xf32, #tpu.memory_space<vmem>>, vector<2x8x2xf32>,
      %cst_70 = arith.constant 0.000000e+00 : f32
      %74 = vector.broadcast %cst_70 : f32 to vector<2x8x32xf32>
      %c0_71 = arith.constant 0 : index
      %c0_72 = arith.constant 0 : index
      %c0_73 = arith.constant 0 : index
      %75 = vector.load %arg12[%c0_71, %c0_72, %c0_73] : memref<2x8x32xf32, #tpu.memory_space<vmem>>, vector<2x8x32xf32>
      tpu.vector_store %arg12[%c0_71, %c0_72, %c0_73], %74 {strides = array<i32>} : memref<2x8x32xf32, #tpu.memory_space<vmem>>, vector<2x8x32xf32>,
      %c0_74 = arith.constant 0 : index
      %c0_75 = arith.constant 0 : index
      %c0_76 = arith.constant 0 : index
      %76 = vector.load %arg5[%c0_74, %c0_75, %c0_76] : memref<3x32x32xf32, #tpu.memory_space<vmem>>, vector<1x32x32xf32>
      %77 = vector.shape_cast %76 : vector<1x32x32xf32> to vector<32x32xf32>
      %c0_77 = arith.constant 0 : index
      %c0_78 = arith.constant 0 : index
      %c0_79 = arith.constant 0 : index
      %78 = vector.load %arg2[%c0_77, %c0_78, %c0_79] : memref<2x8x32xf32, #tpu.memory_space<vmem>>, vector<2x8x32xf32>
      %79 = vector.shape_cast %78 : vector<2x8x32xf32> to vector<16x32xf32>
      %cst_80 = arith.constant dense<0.000000e+00> : vector<16x32xf32>
      %80 = tpu.matmul %79, %77, %cst_80 {dimension_numbers = #tpu.dot_dimension_numbers<[1], [0], [0], [1], [0, 0, 1, 1], [], []>} : vector<16x32xf32>, vector<32x32xf32>, vector<16x32xf32> -> vector<16x32xf32>
      %cst_81 = arith.constant 0.176776692 : f32
      %81 = vector.broadcast %cst_81 : f32 to vector<16x32xf32>
      %82 = arith.mulf %80, %81 : vector<16x32xf32>
      %83 = vector.shape_cast %82 : vector<16x32xf32> to vector<2x8x32xf32>
      %c0_82 = arith.constant 0 : index
      %c0_83 = arith.constant 0 : index
      %c0_84 = arith.constant 0 : index
      %84 = vector.load %arg9[%c0_82, %c0_83, %c0_84] : memref<2x8x32xf32, #tpu.memory_space<vmem>>, vector<2x8x32xf32>
      tpu.vector_store %arg9[%c0_82, %c0_83, %c0_84], %83 {strides = array<i32>} : memref<2x8x32xf32, #tpu.memory_space<vmem>>, vector<2x8x32xf32>,
    } else {
    }
    %c0_4 = arith.constant 0 : index
    %c0_5 = arith.constant 0 : index
    %c0_6 = arith.constant 0 : index
    %7 = vector.load %arg3[%c0_4, %c0_5, %c0_6] : memref<2x8x32xf32, #tpu.memory_space<vmem>>, vector<2x8x32xf32>
    %8 = vector.shape_cast %7 : vector<2x8x32xf32> to vector<16x32xf32>
    %c0_7 = arith.constant 0 : index
    %c0_8 = arith.constant 0 : index
    %c0_9 = arith.constant 0 : index
    %9 = vector.load %arg4[%c0_7, %c0_8, %c0_9] : memref<2x8x32xf32, #tpu.memory_space<vmem>>, vector<2x8x32xf32>
    %10 = vector.shape_cast %9 : vector<2x8x32xf32> to vector<16x32xf32>
    %cst = arith.constant dense<0.000000e+00> : vector<16x32xf32>
    %11 = tpu.matmul %8, %1, %cst {dimension_numbers = #tpu.dot_dimension_numbers<[1], [0], [0], [1], [0, 0, 1, 1], [], []>} : vector<16x32xf32>, vector<32x32xf32>, vector<16x32xf32> -> vector<16x32xf32>
    %12 = vector.shape_cast %11 : vector<16x32xf32> to vector<2x8x32xf32>
    %cst_10 = arith.constant dense<0.000000e+00> : vector<16x32xf32>
    %13 = tpu.matmul %10, %3, %cst_10 {dimension_numbers = #tpu.dot_dimension_numbers<[1], [0], [0], [1], [0, 0, 1, 1], [], []>} : vector<16x32xf32>, vector<32x32xf32>, vector<16x32xf32> -> vector<16x32xf32>
    %14 = vector.shape_cast %13 : vector<16x32xf32> to vector<2x8x32xf32>
    %c0_11 = arith.constant 0 : index
    %c0_12 = arith.constant 0 : index
    %c0_13 = arith.constant 0 : index
    %15 = vector.load %arg9[%c0_11, %c0_12, %c0_13] : memref<2x8x32xf32, #tpu.memory_space<vmem>>, vector<2x8x16xf32>
    %16 = vector.extract_strided_slice %12 {offsets = [0, 0, 0], sizes = [2, 8, 16], strides = [1, 1, 1]} : vector<2x8x32xf32> to vector<2x8x16xf32>
    %17 = vector.extract_strided_slice %14 {offsets = [0, 0, 0], sizes = [2, 8, 16], strides = [1, 1, 1]} : vector<2x8x32xf32> to vector<2x8x16xf32>
    "tpu.trace_start"() <{level = 10 : i32, message = "nqd,nkd->nqk"}> : () -> ()
    %cst_14 = arith.constant dense<0.000000e+00> : vector<2x8x8xf32>
    %18 = tpu.matmul %15, %16, %cst_14 {dimension_numbers = #tpu.dot_dimension_numbers<[2], [2], [1], [1], [0, 0, 0, 1, 1, 1], [0], [0]>} : vector<2x8x16xf32>, vector<2x8x16xf32>, vector<2x8x8xf32> -> vector<2x8x8xf32>
    "tpu.trace_stop"() : () -> ()
    %c0_15 = arith.constant 0 : index
    %c0_16 = arith.constant 0 : index
    %c0_17 = arith.constant 0 : index
    %19 = vector.load %arg10[%c0_15, %c0_16, %c0_17] : memref<2x8x2xf32, #tpu.memory_space<vmem>>, vector<2x8x1xf32>
    %c0_18 = arith.constant 0 : index
    %c0_19 = arith.constant 0 : index
    %c0_20 = arith.constant 0 : index
    %20 = vector.load %arg11[%c0_18, %c0_19, %c0_20] : memref<2x8x2xf32, #tpu.memory_space<vmem>>, vector<2x8x1xf32>
    %cst_21 = arith.constant dense<0xFF800000> : vector<2x8xf32>
    %21 = vector.multi_reduction <maximumf>, %18, %cst_21 [2] : vector<2x8x8xf32> to vector<2x8xf32>
    %22 = vector.shape_cast %21 : vector<2x8xf32> to vector<2x8x1xf32>
    %23 = arith.maximumf %19, %22 : vector<2x8x1xf32>
    %24 = arith.subf %19, %23 : vector<2x8x1xf32>
    %25 = math.exp %24 : vector<2x8x1xf32>
    %26 = vector.broadcast %23 : vector<2x8x1xf32> to vector<2x8x8xf32>
    %27 = arith.subf %18, %26 : vector<2x8x8xf32>
    %28 = math.exp %27 : vector<2x8x8xf32>
    %29 = arith.mulf %25, %20 : vector<2x8x1xf32>
    %cst_22 = arith.constant dense<0.000000e+00> : vector<2x8xf32>
    %30 = vector.multi_reduction <add>, %28, %cst_22 [2] : vector<2x8x8xf32> to vector<2x8xf32>
    %31 = vector.shape_cast %30 : vector<2x8xf32> to vector<2x8x1xf32>
    %32 = arith.addf %29, %31 : vector<2x8x1xf32>
    %c0_23 = arith.constant 0 : index
    %c0_24 = arith.constant 0 : index
    %c0_25 = arith.constant 0 : index
    %33 = vector.load %arg11[%c0_23, %c0_24, %c0_25] : memref<2x8x2xf32, #tpu.memory_space<vmem>>, vector<2x8x1xf32>
    tpu.vector_store %arg11[%c0_23, %c0_24, %c0_25], %32 {strides = array<i32>} : memref<2x8x2xf32, #tpu.memory_space<vmem>>, vector<2x8x1xf32>,
    %c0_26 = arith.constant 0 : index
    %c0_27 = arith.constant 0 : index
    %c0_28 = arith.constant 0 : index
    %34 = vector.load %arg10[%c0_26, %c0_27, %c0_28] : memref<2x8x2xf32, #tpu.memory_space<vmem>>, vector<2x8x1xf32>
    tpu.vector_store %arg10[%c0_26, %c0_27, %c0_28], %23 {strides = array<i32>} : memref<2x8x2xf32, #tpu.memory_space<vmem>>, vector<2x8x1xf32>,
    "tpu.trace_start"() <{level = 10 : i32, message = "nqk,nkd->nqd"}> : () -> ()
    %cst_29 = arith.constant dense<0.000000e+00> : vector<2x8x16xf32>
    %35 = tpu.matmul %28, %17, %cst_29 {dimension_numbers = #tpu.dot_dimension_numbers<[2], [1], [1], [2], [0, 0, 0, 1, 1, 2], [0], [0]>} : vector<2x8x8xf32>, vector<2x8x16xf32>, vector<2x8x16xf32> -> vector<2x8x16xf32>
    "tpu.trace_stop"() : () -> ()
    %c0_30 = arith.constant 0 : index
    %c0_31 = arith.constant 0 : index
    %c0_32 = arith.constant 0 : index
    %36 = vector.load %arg12[%c0_30, %c0_31, %c0_32] : memref<2x8x32xf32, #tpu.memory_space<vmem>>, vector<2x8x16xf32>
    %37 = vector.broadcast %25 : vector<2x8x1xf32> to vector<2x8x16xf32>
    %38 = arith.mulf %37, %36 : vector<2x8x16xf32>
    %39 = arith.addf %38, %35 : vector<2x8x16xf32>
    %c0_33 = arith.constant 0 : index
    %c0_34 = arith.constant 0 : index
    %c0_35 = arith.constant 0 : index
    %40 = vector.load %arg12[%c0_33, %c0_34, %c0_35] : memref<2x8x32xf32, #tpu.memory_space<vmem>>, vector<2x8x16xf32>
    tpu.vector_store %arg12[%c0_33, %c0_34, %c0_35], %39 {strides = array<i32>} : memref<2x8x32xf32, #tpu.memory_space<vmem>>, vector<2x8x16xf32>,
    %c0_36 = arith.constant 0 : index
    %c0_37 = arith.constant 0 : index
    %c16 = arith.constant 16 : index
    %41 = vector.load %arg9[%c0_36, %c0_37, %c16] : memref<2x8x32xf32, #tpu.memory_space<vmem>>, vector<2x8x16xf32>
    %42 = vector.extract_strided_slice %12 {offsets = [0, 0, 16], sizes = [2, 8, 16], strides = [1, 1, 1]} : vector<2x8x32xf32> to vector<2x8x16xf32>
    %43 = vector.extract_strided_slice %14 {offsets = [0, 0, 16], sizes = [2, 8, 16], strides = [1, 1, 1]} : vector<2x8x32xf32> to vector<2x8x16xf32>
    "tpu.trace_start"() <{level = 10 : i32, message = "nqd,nkd->nqk"}> : () -> ()
    %cst_38 = arith.constant dense<0.000000e+00> : vector<2x8x8xf32>
    %44 = tpu.matmul %41, %42, %cst_38 {dimension_numbers = #tpu.dot_dimension_numbers<[2], [2], [1], [1], [0, 0, 0, 1, 1, 1], [0], [0]>} : vector<2x8x16xf32>, vector<2x8x16xf32>, vector<2x8x8xf32> -> vector<2x8x8xf32>
    "tpu.trace_stop"() : () -> ()
    %c0_39 = arith.constant 0 : index
    %c0_40 = arith.constant 0 : index
    %c1_41 = arith.constant 1 : index
    %45 = vector.load %arg10[%c0_39, %c0_40, %c1_41] : memref<2x8x2xf32, #tpu.memory_space<vmem>>, vector<2x8x1xf32>
    %c0_42 = arith.constant 0 : index
    %c0_43 = arith.constant 0 : index
    %c1_44 = arith.constant 1 : index
    %46 = vector.load %arg11[%c0_42, %c0_43, %c1_44] : memref<2x8x2xf32, #tpu.memory_space<vmem>>, vector<2x8x1xf32>
    %cst_45 = arith.constant dense<0xFF800000> : vector<2x8xf32>
    %47 = vector.multi_reduction <maximumf>, %44, %cst_45 [2] : vector<2x8x8xf32> to vector<2x8xf32>
    %48 = vector.shape_cast %47 : vector<2x8xf32> to vector<2x8x1xf32>
    %49 = arith.maximumf %45, %48 : vector<2x8x1xf32>
    %50 = arith.subf %45, %49 : vector<2x8x1xf32>
    %51 = math.exp %50 : vector<2x8x1xf32>
    %52 = vector.broadcast %49 : vector<2x8x1xf32> to vector<2x8x8xf32>
    %53 = arith.subf %44, %52 : vector<2x8x8xf32>
    %54 = math.exp %53 : vector<2x8x8xf32>
    %55 = arith.mulf %51, %46 : vector<2x8x1xf32>
    %cst_46 = arith.constant dense<0.000000e+00> : vector<2x8xf32>
    %56 = vector.multi_reduction <add>, %54, %cst_46 [2] : vector<2x8x8xf32> to vector<2x8xf32>
    %57 = vector.shape_cast %56 : vector<2x8xf32> to vector<2x8x1xf32>
    %58 = arith.addf %55, %57 : vector<2x8x1xf32>
    %c0_47 = arith.constant 0 : index
    %c0_48 = arith.constant 0 : index
    %c1_49 = arith.constant 1 : index
    %59 = vector.load %arg11[%c0_47, %c0_48, %c1_49] : memref<2x8x2xf32, #tpu.memory_space<vmem>>, vector<2x8x1xf32>
    tpu.vector_store %arg11[%c0_47, %c0_48, %c1_49], %58 {strides = array<i32>} : memref<2x8x2xf32, #tpu.memory_space<vmem>>, vector<2x8x1xf32>,
    %c0_50 = arith.constant 0 : index
    %c0_51 = arith.constant 0 : index
    %c1_52 = arith.constant 1 : index
    %60 = vector.load %arg10[%c0_50, %c0_51, %c1_52] : memref<2x8x2xf32, #tpu.memory_space<vmem>>, vector<2x8x1xf32>
    tpu.vector_store %arg10[%c0_50, %c0_51, %c1_52], %49 {strides = array<i32>} : memref<2x8x2xf32, #tpu.memory_space<vmem>>, vector<2x8x1xf32>,
    "tpu.trace_start"() <{level = 10 : i32, message = "nqk,nkd->nqd"}> : () -> ()
    %cst_53 = arith.constant dense<0.000000e+00> : vector<2x8x16xf32>
    %61 = tpu.matmul %54, %43, %cst_53 {dimension_numbers = #tpu.dot_dimension_numbers<[2], [1], [1], [2], [0, 0, 0, 1, 1, 2], [0], [0]>} : vector<2x8x8xf32>, vector<2x8x16xf32>, vector<2x8x16xf32> -> vector<2x8x16xf32>
    "tpu.trace_stop"() : () -> ()
    %c0_54 = arith.constant 0 : index
    %c0_55 = arith.constant 0 : index
    %c16_56 = arith.constant 16 : index
    %62 = vector.load %arg12[%c0_54, %c0_55, %c16_56] : memref<2x8x32xf32, #tpu.memory_space<vmem>>, vector<2x8x16xf32>
    %63 = vector.broadcast %51 : vector<2x8x1xf32> to vector<2x8x16xf32>
    %64 = arith.mulf %63, %62 : vector<2x8x16xf32>
    %65 = arith.addf %64, %61 : vector<2x8x16xf32>
    %c0_57 = arith.constant 0 : index
    %c0_58 = arith.constant 0 : index
    %c16_59 = arith.constant 16 : index
    %66 = vector.load %arg12[%c0_57, %c0_58, %c16_59] : memref<2x8x32xf32, #tpu.memory_space<vmem>>, vector<2x8x16xf32>
    tpu.vector_store %arg12[%c0_57, %c0_58, %c16_59], %65 {strides = array<i32>} : memref<2x8x32xf32, #tpu.memory_space<vmem>>, vector<2x8x16xf32>,
    %c0_i32_60 = arith.constant 0 : i32
    %67 = arith.cmpi eq, %arg1, %c0_i32_60 : i32
    %68 = arith.extui %67 : i1 to i32
    %c0_i32_61 = arith.constant 0 : i32
    %69 = arith.cmpi ne, %68, %c0_i32_61 : i32
    scf.if %69 {
      %c0_62 = arith.constant 0 : index
      %c0_63 = arith.constant 0 : index
      %c0_64 = arith.constant 0 : index
      %70 = vector.load %arg11[%c0_62, %c0_63, %c0_64] : memref<2x8x2xf32, #tpu.memory_space<vmem>>, vector<2x8x2xf32>
      %71 = tpu.reciprocal %70 {approx = true} : vector<2x8x2xf32> -> vector<2x8x2xf32>
      %c0_65 = arith.constant 0 : index
      %c0_66 = arith.constant 0 : index
      %c0_67 = arith.constant 0 : index
      %72 = vector.load %arg12[%c0_65, %c0_66, %c0_67] : memref<2x8x32xf32, #tpu.memory_space<vmem>>, vector<2x8x16xf32>
      %73 = vector.extract_strided_slice %71 {offsets = [0, 0, 0], sizes = [2, 8, 1], strides = [1, 1, 1]} : vector<2x8x2xf32> to vector<2x8x1xf32>
      %74 = vector.broadcast %73 : vector<2x8x1xf32> to vector<2x8x16xf32>
      %75 = arith.mulf %72, %74 : vector<2x8x16xf32>
      %c0_68 = arith.constant 0 : index
      %c0_69 = arith.constant 0 : index
      %c0_70 = arith.constant 0 : index
      %76 = vector.load %arg12[%c0_68, %c0_69, %c0_70] : memref<2x8x32xf32, #tpu.memory_space<vmem>>, vector<2x8x16xf32>
      tpu.vector_store %arg12[%c0_68, %c0_69, %c0_70], %75 {strides = array<i32>} : memref<2x8x32xf32, #tpu.memory_space<vmem>>, vector<2x8x16xf32>,
      %c0_71 = arith.constant 0 : index
      %c0_72 = arith.constant 0 : index
      %c16_73 = arith.constant 16 : index
      %77 = vector.load %arg12[%c0_71, %c0_72, %c16_73] : memref<2x8x32xf32, #tpu.memory_space<vmem>>, vector<2x8x16xf32>
      %78 = vector.extract_strided_slice %71 {offsets = [0, 0, 1], sizes = [2, 8, 1], strides = [1, 1, 1]} : vector<2x8x2xf32> to vector<2x8x1xf32>
      %79 = vector.broadcast %78 : vector<2x8x1xf32> to vector<2x8x16xf32>
      %80 = arith.mulf %77, %79 : vector<2x8x16xf32>
      %c0_74 = arith.constant 0 : index
      %c0_75 = arith.constant 0 : index
      %c16_76 = arith.constant 16 : index
      %81 = vector.load %arg12[%c0_74, %c0_75, %c16_76] : memref<2x8x32xf32, #tpu.memory_space<vmem>>, vector<2x8x16xf32>
      tpu.vector_store %arg12[%c0_74, %c0_75, %c16_76], %80 {strides = array<i32>} : memref<2x8x32xf32, #tpu.memory_space<vmem>>, vector<2x8x16xf32>,
      %c0_77 = arith.constant 0 : index
      %c0_78 = arith.constant 0 : index
      %c0_79 = arith.constant 0 : index
      %82 = vector.load %arg12[%c0_77, %c0_78, %c0_79] : memref<2x8x32xf32, #tpu.memory_space<vmem>>, vector<2x8x32xf32>
      %83 = vector.shape_cast %82 : vector<2x8x32xf32> to vector<16x32xf32>
      %c0_80 = arith.constant 0 : index
      %c0_81 = arith.constant 0 : index
      %84 = vector.load %arg6[%c0_80, %c0_81] : memref<32x32xf32, #tpu.memory_space<vmem>>, vector<32x32xf32>
      %cst_82 = arith.constant dense<0.000000e+00> : vector<16x32xf32>
      %85 = tpu.matmul %83, %84, %cst_82 {dimension_numbers = #tpu.dot_dimension_numbers<[1], [0], [0], [1], [0, 0, 1, 1], [], []>} : vector<16x32xf32>, vector<32x32xf32>, vector<16x32xf32> -> vector<16x32xf32>
      %c0_83 = arith.constant 0 : index
      %c0_84 = arith.constant 0 : index
      %86 = vector.load %arg7[%c0_83, %c0_84] : memref<1x32xf32, #tpu.memory_space<vmem>>, vector<1x32xf32>
      %87 = vector.broadcast %86 : vector<1x32xf32> to vector<16x32xf32>
      %88 = arith.addf %85, %87 : vector<16x32xf32>
      %89 = vector.shape_cast %88 : vector<16x32xf32> to vector<2x8x32xf32>
      %c0_85 = arith.constant 0 : index
      %c0_86 = arith.constant 0 : index
      %c0_87 = arith.constant 0 : index
      %90 = vector.load %arg8[%c0_85, %c0_86, %c0_87] : memref<2x8x32xf32, #tpu.memory_space<vmem>>, vector<2x8x32xf32>
      tpu.vector_store %arg8[%c0_85, %c0_86, %c0_87], %89 {strides = array<i32>} : memref<2x8x32xf32, #tpu.memory_space<vmem>>, vector<2x8x32xf32>,
    } else {
    }
    return
  }
  func.func @transform_0(%arg0: i32, %arg1: i32) -> (i32, i32, i32) {
    %c0_i32 = arith.constant 0 : i32
    %c0_i32_0 = arith.constant 0 : i32
    %c0_i32_1 = arith.constant 0 : i32
    return %arg0, %c0_i32, %c0_i32_0 : i32, i32, i32
  }
  func.func @transform_1(%arg0: i32, %arg1: i32) -> (i32, i32, i32) {
    %c0_i32 = arith.constant 0 : i32
    %c0_i32_0 = arith.constant 0 : i32
    return %arg0, %arg1, %c0_i32 : i32, i32, i32
  }
  func.func @transform_2(%arg0: i32, %arg1: i32) -> (i32, i32, i32) {
    %c0_i32 = arith.constant 0 : i32
    %c0_i32_0 = arith.constant 0 : i32
    return %arg0, %arg1, %c0_i32 : i32, i32, i32
  }
  func.func @transform_3(%arg0: i32, %arg1: i32) -> (i32, i32, i32) {
    %c0_i32 = arith.constant 0 : i32
    %c0_i32_0 = arith.constant 0 : i32
    %c0_i32_1 = arith.constant 0 : i32
    %c0_i32_2 = arith.constant 0 : i32
    return %c0_i32, %c0_i32_0, %c0_i32_1 : i32, i32, i32
  }
  func.func @transform_4(%arg0: i32, %arg1: i32) -> (i32, i32) {
    %c0_i32 = arith.constant 0 : i32
    %c0_i32_0 = arith.constant 0 : i32
    %c0_i32_1 = arith.constant 0 : i32
    return %c0_i32, %c0_i32_0 : i32, i32
  }
  func.func @transform_5(%arg0: i32, %arg1: i32) -> (i32, i32) {
    %c0_i32 = arith.constant 0 : i32
    %c0_i32_0 = arith.constant 0 : i32
    %c0_i32_1 = arith.constant 0 : i32
    return %c0_i32, %c0_i32_0 : i32, i32
  }
  func.func @transform_6(%arg0: i32, %arg1: i32) -> (i32, i32, i32) {
    %c0_i32 = arith.constant 0 : i32
    %c0_i32_0 = arith.constant 0 : i32
    %c0_i32_1 = arith.constant 0 : i32
    return %arg0, %c0_i32, %c0_i32_0 : i32, i32, i32
  }
}

</mosaic_0001>

<llo_original>
// kernel: tpu_custom_call.1
$region0: #{tpu_custom_call.1}
  #allocation0 [shape = 'u32[]', space=smem, size = 0x4, offset = 0x4, fixed_abs, tag = 'smem constant byte address 0x4 - core index']
  #allocation1 [shape = 'u32[72,128]{1,0:T(1,128)}', space=vmem, size = 0x9000, scoped, tag = 'internal scratch']
  #allocation2 [shape = 'f32[2,8,32]{2,1,0:T(8,128)}', space=vmem, size = 0x2000, scoped, tag = 'scratch operand']
  #allocation3 [shape = 'f32[2,8,2]{2,1,0:T(8,128)}', space=vmem, size = 0x2000, scoped, tag = 'scratch operand']
  #allocation4 [shape = 'f32[2,8,2]{2,1,0:T(8,128)}', space=vmem, size = 0x2000, scoped, tag = 'scratch operand']
  #allocation5 [shape = 'f32[2,8,32]{2,1,0:T(8,128)}', space=vmem, size = 0x2000, scoped, tag = 'scratch operand']
  %s0 = inlined_call_operand.hbm [shape: f32[2,8,32], index: 0, kind: input, shape index: {}]
  %s1 = inlined_call_operand.hbm [shape: f32[2,8,32], index: 1, kind: input, shape index: {}]
  %s2 = inlined_call_operand.hbm [shape: f32[2,8,32], index: 2, kind: input, shape index: {}]
  %s3 = inlined_call_operand.hbm [shape: f32[3,32,32], index: 3, kind: input, shape index: {}]
  %s4 = inlined_call_operand.hbm [shape: f32[32,32], index: 4, kind: input, shape index: {}]
  %s5 = inlined_call_operand.vmem [shape: f32[1,32], index: 5, kind: input, shape index: {}]
  %s6 = inlined_call_operand.hbm [shape: f32[2,8,32], index: 6, kind: output, shape index: {}]
  %s7 = sld [smem:[#allocation0]]
  $region62: #{tpu_custom_call.1} parent=0
    _
  %s9 = ssub.s32 1, %s7
  %s10 = scalar_select 0, %s9, %s7
  $region1: #{tpu_custom_call.1} parent=0
    #allocation6 [shape = 'u8[8192]{0}', space=vmem, size = 0x2000, scoped, tag = 'input window, operand 0, single buffered']
    #allocation7 [shape = 's32[1]{0}', space=sflag, size = 0x4, scoped, tag = 'scoped memory for tpu_custom_call.1']
    #allocation8 [shape = 's32[1]{0}', space=sflag, size = 0x4, scoped, tag = 'scoped memory for tpu_custom_call.1']
    #allocation9 [shape = 'u8[8192]{0}', space=vmem, size = 0x2000, scoped, tag = 'input window, operand 1, single buffered']
    #allocation10 [shape = 's32[1]{0}', space=sflag, size = 0x4, scoped, tag = 'scoped memory for tpu_custom_call.1']
    #allocation11 [shape = 'u8[8192]{0}', space=vmem, size = 0x2000, scoped, tag = 'input window, operand 2, single buffered']
    #allocation12 [shape = 'u8[49152]{0}', space=vmem, size = 0xc000, scoped, tag = 'input window, operand 3, single buffered']
    #allocation13 [shape = 's32[1]{0}', space=sflag, size = 0x4, scoped, tag = 'scoped memory for tpu_custom_call.1']
    #allocation14 [shape = 'u8[16384]{0}', space=vmem, size = 0x4000, scoped, tag = 'input window, operand 4, single buffered']
    #allocation15 [shape = 'u8[8192]{0}', space=vmem, size = 0x2000, scoped, tag = 'output window, operand 0, single buffered']
    %11 = vsyncpa [#allocation7], 0
    %12 = vsyncpa [#allocation10], 0
    %13 = vsyncpa [#allocation13], 0
    %14 = vsyncpa [#allocation8], 0
    // Predicated region
    $region2: #{tpu_custom_call.1} parent=1 // pred_check
      _
    $region3: #{tpu_custom_call.1} parent=1 // pred_check_branch
      %16 = sbr.rel (0) target = $region5
    $region4: #{tpu_custom_call.1} parent=1 // pred_region
      %18 = vsyncadd [#allocation7], 0
      %s19 = sshll.u32 %s0, 4
      %s20 = int_to_ptr.hbm [resolvable:$true] %s19
      %s21 = sshll.u32 [#allocation6], 4
      %s22 = int_to_ptr.vmem [resolvable:$true] %s21
      %27 = dma.hbm_to_vmem [thread:$0]  %s20, 256, %s22, [#allocation7], 128, 128, 8
    $region5: #{tpu_custom_call.1} parent=1 // pred_fallthru
      _
    // Predicated region
    $region6: #{tpu_custom_call.1} parent=1 // pred_check
      _
    $region7: #{tpu_custom_call.1} parent=1 // pred_check_branch
      %29 = sbr.rel (0) target = $region9
    $region8: #{tpu_custom_call.1} parent=1 // pred_region
      %31 = vsyncadd [#allocation10], 0
      %s32 = sshll.u32 %s1, 4
      %s33 = int_to_ptr.hbm [resolvable:$true] %s32
      %s34 = sshll.u32 [#allocation9], 4
      %s35 = int_to_ptr.vmem [resolvable:$true] %s34
      %40 = dma.hbm_to_vmem [thread:$0]  %s33, 256, %s35, [#allocation10], 128, 128, 8
    $region9: #{tpu_custom_call.1} parent=1 // pred_fallthru
      _
    // Predicated region
    $region10: #{tpu_custom_call.1} parent=1 // pred_check
      _
    $region11: #{tpu_custom_call.1} parent=1 // pred_check_branch
      %42 = sbr.rel (0) target = $region13
    $region12: #{tpu_custom_call.1} parent=1 // pred_region
      %44 = vsyncadd [#allocation10], 0
      %s45 = sshll.u32 %s2, 4
      %s46 = int_to_ptr.hbm [resolvable:$true] %s45
      %s47 = sshll.u32 [#allocation11], 4
      %s48 = int_to_ptr.vmem [resolvable:$true] %s47
      %53 = dma.hbm_to_vmem [thread:$0]  %s46, 256, %s48, [#allocation10], 128, 128, 8
    $region13: #{tpu_custom_call.1} parent=1 // pred_fallthru
      _
    // Predicated region
    $region14: #{tpu_custom_call.1} parent=1 // pred_check
      _
    $region15: #{tpu_custom_call.1} parent=1 // pred_check_branch
      %55 = sbr.rel (0) target = $region17
    $region16: #{tpu_custom_call.1} parent=1 // pred_region
      %57 = vsyncadd [#allocation13], 0
      %s58 = sshll.u32 %s3, 4
      %s59 = int_to_ptr.hbm [resolvable:$true] %s58
      %s60 = sshll.u32 [#allocation12], 4
      %s61 = int_to_ptr.vmem [resolvable:$true] %s60
      %66 = dma.hbm_to_vmem [thread:$0]  %s59, 1536, %s61, [#allocation13], 128, 128, 8
    $region17: #{tpu_custom_call.1} parent=1 // pred_fallthru
      _
    // Predicated region
    $region18: #{tpu_custom_call.1} parent=1 // pred_check
      _
    $region19: #{tpu_custom_call.1} parent=1 // pred_check_branch
      %68 = sbr.rel (0) target = $region21
    $region20: #{tpu_custom_call.1} parent=1 // pred_region
      %70 = vsyncadd [#allocation13], 0
      %s71 = sshll.u32 %s4, 4
      %s72 = int_to_ptr.hbm [resolvable:$true] %s71
      %s73 = sshll.u32 [#allocation14], 4
      %s74 = int_to_ptr.vmem [resolvable:$true] %s73
      %79 = dma.hbm_to_vmem [thread:$0]  %s72, 512, %s74, [#allocation13], 128, 128, 8
    $region21: #{tpu_custom_call.1} parent=1 // pred_fallthru
      _
    // Predicated region
    $region22: #{tpu_custom_call.1} parent=1 // pred_check
      _
    $region23: #{tpu_custom_call.1} parent=1 // pred_check_branch
      %81 = sbr.rel (0) target = $region25
    $region24: #{tpu_custom_call.1} parent=1 // pred_region
      _
    $region25: #{tpu_custom_call.1} parent=1 // pred_fallthru
      _
    // Predicated region
    $region26: #{tpu_custom_call.1} parent=1 // pred_check
      _
    $region27: #{tpu_custom_call.1} parent=1 // pred_check_branch
      %83 = sbr.rel (0) target = $region29
    $region28: #{tpu_custom_call.1} parent=1 // pred_region
      %85 = dma.done [#allocation7], 256
    $region29: #{tpu_custom_call.1} parent=1 // pred_fallthru
      _
    // Predicated region
    $region30: #{tpu_custom_call.1} parent=1 // pred_check
      _
    $region31: #{tpu_custom_call.1} parent=1 // pred_check_branch
      %87 = sbr.rel (0) target = $region33
    $region32: #{tpu_custom_call.1} parent=1 // pred_region
      %89 = dma.done [#allocation10], 256
    $region33: #{tpu_custom_call.1} parent=1 // pred_fallthru
      _
    // Predicated region
    $region34: #{tpu_custom_call.1} parent=1 // pred_check
      _
    $region35: #{tpu_custom_call.1} parent=1 // pred_check_branch
      %91 = sbr.rel (0) target = $region37
    $region36: #{tpu_custom_call.1} parent=1 // pred_region
      %93 = dma.done [#allocation10], 256
    $region37: #{tpu_custom_call.1} parent=1 // pred_fallthru
      _
    // Predicated region
    $region38: #{tpu_custom_call.1} parent=1 // pred_check
      _
    $region39: #{tpu_custom_call.1} parent=1 // pred_check_branch
      %95 = sbr.rel (0) target = $region41
    $region40: #{tpu_custom_call.1} parent=1 // pred_region
      %97 = dma.done [#allocation13], 1536
    $region41: #{tpu_custom_call.1} parent=1 // pred_fallthru
      _
    // Predicated region
    $region42: #{tpu_custom_call.1} parent=1 // pred_check
      _
    $region43: #{tpu_custom_call.1} parent=1 // pred_check_branch
      %99 = sbr.rel (0) target = $region45
    $region44: #{tpu_custom_call.1} parent=1 // pred_region
      %101 = dma.done [#allocation13], 512
    $region45: #{tpu_custom_call.1} parent=1 // pred_fallthru
      _
    %s102 = scalar_lea.vmem [#allocation12], 32
    %v103 = vld [vmem:[%s102] sm:$0xff]
    %v104 = vld [vmem:[%s102 + $0x8] sm:$0xff]
    %v105 = vld [vmem:[%s102 + $0x10] sm:$0xff]
    %v106 = vld [vmem:[%s102 + $0x18] sm:$0xff]
    %s107 = scalar_lea.vmem [#allocation12], 64
    %v108 = vld [vmem:[%s107] sm:$0xff]
    %v109 = vld [vmem:[%s107 + $0x8] sm:$0xff]
    %v110 = vld [vmem:[%s107 + $0x10] sm:$0xff]
    %v111 = vld [vmem:[%s107 + $0x18] sm:$0xff]
    %p112 = scmp.eq.s32.totalorder 0, 0
    // Predicated region
    $region46: #{tpu_custom_call.1} parent=1 // pred_check
      %p113 = pneg %p112
    $region47: #{tpu_custom_call.1} parent=1 // pred_check_branch
      %115 = sbr.rel (%p113) target = $region49
    $region48: #{tpu_custom_call.1} parent=1 // pred_region
      %vm116 = vcmask 15360
      %117 = vst.msk [vmem:[#allocation3] sm:$0xff] %vm116, -inf
      %118 = vst.msk [vmem:[#allocation3 + $0x8] sm:$0xff] %vm116, -inf
      %119 = vst.msk [vmem:[#allocation4] sm:$0xff] %vm116, 0.0
      %120 = vst.msk [vmem:[#allocation4 + $0x8] sm:$0xff] %vm116, 0.0
      %vm121 = vcmask 261120
      %122 = vst.msk [vmem:[#allocation5] sm:$0xff] %vm121, 0.0
      %123 = vst.msk [vmem:[#allocation5 + $0x8] sm:$0xff] %vm121, 0.0
      %v124 = vld [vmem:[#allocation12] sm:$0xff]
      %v125 = vld [vmem:[#allocation12 + $0x8] sm:$0xff]
      %v126 = vld [vmem:[#allocation12 + $0x10] sm:$0xff]
      %v127 = vld [vmem:[#allocation12 + $0x18] sm:$0xff]
      %v128 = vld [vmem:[#allocation6] sm:$0xff]
      %v129 = vld [vmem:[#allocation6 + $0x8] sm:$0xff]
      %v131 = vsel %vm121, %v128, 0
      %v134 = vsel %vm121, %v129, 0
      %136 = vmatpush.msra.mxu0 0.0
      %137 = vmatpush.msra.mxu0 0.0
      %138 = vmatpush.msra.mxu0 0.0
      %139 = vmatpush.msra.mxu0 0.0
      %140 = vmatpush.msra.mxu0 0.0
      %141 = vmatpush.msra.mxu0 0.0
      %142 = vmatpush.msra.mxu0 0.0
      %143 = vmatpush.msra.mxu0 0.0
      %144 = vmatpush.msra.mxu0 0.0
      %145 = vmatpush.msra.mxu0 0.0
      %146 = vmatpush.msra.mxu0 0.0
      %147 = vmatpush.msra.mxu0 0.0
      %148 = vmatpush.msra.mxu0 %v127
      %149 = vmatpush.msra.mxu0 %v126
      %150 = vmatpush.msra.mxu0 %v125
      %151 = vmatpush.msra.mxu0 %v124
      %152 = vmatmul.f32.gmra.mxu0 %v131
      %v153 = vpop.f32.mrf.mxu0
      %v154 = vadd.f32 0.0, %v153
      %155 = vmatmul.f32.gmra.mxu0 %v134
      %v156 = vpop.f32.mrf.mxu0
      %v157 = vadd.f32 0.0, %v156
      %158 = vdwg.mxu0
      %v159 = vmul.f32 %v154, 0.17677669
      %v160 = vmul.f32 %v157, 0.17677669
      %161 = vst.msk [vmem:[#allocation2] sm:$0xff] %vm121, %v159
      %162 = vst.msk [vmem:[#allocation2 + $0x8] sm:$0xff] %vm121, %v160
    $region49: #{tpu_custom_call.1} parent=1 // pred_fallthru
      _
    %v163 = vld [vmem:[#allocation9] sm:$0xff]
    %v164 = vld [vmem:[#allocation9 + $0x8] sm:$0xff]
    %v165 = vld [vmem:[#allocation11] sm:$0xff]
    %v166 = vld [vmem:[#allocation11 + $0x8] sm:$0xff]
    %vm167 = vcmask 261120
    %v169 = vsel %vm167, %v163, 0
    %v172 = vsel %vm167, %v164, 0
    %174 = vmatpush.msra.mxu0 0.0
    %175 = vmatpush.msra.mxu0 0.0
    %176 = vmatpush.msra.mxu0 0.0
    %177 = vmatpush.msra.mxu0 0.0
    %178 = vmatpush.msra.mxu0 0.0
    %179 = vmatpush.msra.mxu0 0.0
    %180 = vmatpush.msra.mxu0 0.0
    %181 = vmatpush.msra.mxu0 0.0
    %182 = vmatpush.msra.mxu0 0.0
    %183 = vmatpush.msra.mxu0 0.0
    %184 = vmatpush.msra.mxu0 0.0
    %185 = vmatpush.msra.mxu0 0.0
    %186 = vmatpush.msra.mxu0 %v106
    %187 = vmatpush.msra.mxu0 %v105
    %188 = vmatpush.msra.mxu0 %v104
    %189 = vmatpush.msra.mxu0 %v103
    %190 = vmatmul.f32.gmra.mxu0 %v169
    %v191 = vpop.f32.mrf.mxu0
    %v192 = vadd.f32 0.0, %v191
    %193 = vmatmul.f32.gmra.mxu0 %v172
    %v194 = vpop.f32.mrf.mxu0
    %v195 = vadd.f32 0.0, %v194
    %196 = vdwg.mxu0
    %v198 = vsel %vm167, %v165, 0
    %v201 = vsel %vm167, %v166, 0
    %203 = vmatpush.msra.mxu0 0.0
    %204 = vmatpush.msra.mxu0 0.0
    %205 = vmatpush.msra.mxu0 0.0
    %206 = vmatpush.msra.mxu0 0.0
    %207 = vmatpush.msra.mxu0 0.0
    %208 = vmatpush.msra.mxu0 0.0
    %209 = vmatpush.msra.mxu0 0.0
    %210 = vmatpush.msra.mxu0 0.0
    %211 = vmatpush.msra.mxu0 0.0
    %212 = vmatpush.msra.mxu0 0.0
    %213 = vmatpush.msra.mxu0 0.0
    %214 = vmatpush.msra.mxu0 0.0
    %215 = vmatpush.msra.mxu0 %v111
    %216 = vmatpush.msra.mxu0 %v110
    %217 = vmatpush.msra.mxu0 %v109
    %218 = vmatpush.msra.mxu0 %v108
    %219 = vmatmul.f32.gmra.mxu0 %v198
    %v220 = vpop.f32.mrf.mxu0
    %v221 = vadd.f32 0.0, %v220
    %222 = vmatmul.f32.gmra.mxu0 %v201
    %v223 = vpop.f32.mrf.mxu0
    %v224 = vadd.f32 0.0, %v223
    %225 = vdwg.mxu0
    %v226 = vld [vmem:[#allocation2] sm:$0xff]
    %v227 = vld [vmem:[#allocation2 + $0x8] sm:$0xff]
    %vm228 = vcmask 130048
    %v230 = vsel %vm228, %v226, 0
    %v233 = vsel %vm228, %v192, 0
    %235 = vmatpush.xpose.msra.mxu0 0.0
    %236 = vmatpush.xpose.msra.mxu0 0.0
    %237 = vmatpush.xpose.msra.mxu0 0.0
    %238 = vmatpush.xpose.msra.mxu0 0.0
    %239 = vmatpush.xpose.msra.mxu0 0.0
    %240 = vmatpush.xpose.msra.mxu0 0.0
    %241 = vmatpush.xpose.msra.mxu0 0.0
    %242 = vmatpush.xpose.msra.mxu0 0.0
    %243 = vmatpush.xpose.msra.mxu0 0.0
    %244 = vmatpush.xpose.msra.mxu0 0.0
    %245 = vmatpush.xpose.msra.mxu0 0.0
    %246 = vmatpush.xpose.msra.mxu0 0.0
    %247 = vmatpush.xpose.msra.mxu0 0.0
    %248 = vmatpush.xpose.msra.mxu0 0.0
    %249 = vmatpush.xpose.msra.mxu0 0.0
    %250 = vmatpush.xpose.msra.mxu0 %v233
    %251 = vmatmul.f32.gmra.mxu0 %v230
    %v252 = vpop.f32.mrf.mxu0
    %v253 = vadd.f32 0.0, %v252
    %254 = vdwg.mxu0
    %v256 = vsel %vm228, %v227, 0
    %v259 = vsel %vm228, %v195, 0
    %261 = vmatpush.xpose.msra.mxu0 0.0
    %262 = vmatpush.xpose.msra.mxu0 0.0
    %263 = vmatpush.xpose.msra.mxu0 0.0
    %264 = vmatpush.xpose.msra.mxu0 0.0
    %265 = vmatpush.xpose.msra.mxu0 0.0
    %266 = vmatpush.xpose.msra.mxu0 0.0
    %267 = vmatpush.xpose.msra.mxu0 0.0
    %268 = vmatpush.xpose.msra.mxu0 0.0
    %269 = vmatpush.xpose.msra.mxu0 0.0
    %270 = vmatpush.xpose.msra.mxu0 0.0
    %271 = vmatpush.xpose.msra.mxu0 0.0
    %272 = vmatpush.xpose.msra.mxu0 0.0
    %273 = vmatpush.xpose.msra.mxu0 0.0
    %274 = vmatpush.xpose.msra.mxu0 0.0
    %275 = vmatpush.xpose.msra.mxu0 0.0
    %276 = vmatpush.xpose.msra.mxu0 %v259
    %277 = vmatmul.f32.gmra.mxu0 %v256
    %v278 = vpop.f32.mrf.mxu0
    %v279 = vadd.f32 0.0, %v278
    %280 = vdwg.mxu0
    %v281 = vld [vmem:[#allocation3] sm:$0xff]
    %v282 = vld [vmem:[#allocation3 + $0x8] sm:$0xff]
    %v283 = vld [vmem:[#allocation4] sm:$0xff]
    %v284 = vld [vmem:[#allocation4 + $0x8] sm:$0xff]
    %vm285 = vcmask 64512
    %v286 = vsel %vm285, %v253, -inf
    %287 = vmax.xlane.f32.xlu0 %v286
    %v288 = vpop.xlane.xlu0 %287
    %v289 = vsel %vm285, %v279, -inf
    %290 = vmax.xlane.f32.xlu0 %v289
    %v291 = vpop.xlane.xlu0 %290
    %v292 = vmax.f32 %v281, %v288
    %v293 = vmax.f32 %v282, %v291
    %v294 = vsub.f32 %v281, %v292
    %v295 = vsub.f32 %v282, %v293
    %v296 = vmul.f32 %v294, 1.442695
    %v297 = vpow.pop %v296
    %v298 = vmul.f32 %v295, 1.442695
    %v299 = vpow.pop %v298
    %301 = vset.pattern.permute.xlu0 0
    %302 = vperm.xlu0 %301, %v292
    %v303 = vpop.permute.xlu0 %302
    %306 = vset.pattern.permute.xlu0 0
    %307 = vperm.xlu0 %306, %v293
    %v308 = vpop.permute.xlu0 %307
    %v310 = vsub.f32 %v253, %v303
    %v311 = vsub.f32 %v279, %v308
    %v312 = vmul.f32 %v310, 1.442695
    %v313 = vpow.pop %v312
    %v314 = vmul.f32 %v311, 1.442695
    %v315 = vpow.pop %v314
    %v316 = vmul.f32 %v297, %v283
    %v317 = vmul.f32 %v299, %v284
    %v318 = vsel %vm285, %v313, 0.0
    %319 = vadd.xlane.f32.xlu0 %v318
    %v320 = vpop.xlane.xlu0 %319
    %v321 = vsel %vm285, %v315, 0.0
    %322 = vadd.xlane.f32.xlu0 %v321
    %v323 = vpop.xlane.xlu0 %322
    %v324 = vadd.f32 %v316, %v320
    %v325 = vadd.f32 %v317, %v323
    %vm326 = vcmask 7168
    %327 = vst.msk [vmem:[#allocation4] sm:$0xff] %vm326, %v324
    %328 = vst.msk [vmem:[#allocation4 + $0x8] sm:$0xff] %vm326, %v325
    %329 = vst.msk [vmem:[#allocation3] sm:$0xff] %vm326, %v292
    %330 = vst.msk [vmem:[#allocation3 + $0x8] sm:$0xff] %vm326, %v293
    %v332 = vsel %vm285, %v313, 0
    %334 = vmatpush.msra.mxu0 0.0
    %335 = vmatpush.msra.mxu0 0.0
    %336 = vmatpush.msra.mxu0 0.0
    %337 = vmatpush.msra.mxu0 0.0
    %338 = vmatpush.msra.mxu0 0.0
    %339 = vmatpush.msra.mxu0 0.0
    %340 = vmatpush.msra.mxu0 0.0
    %341 = vmatpush.msra.mxu0 0.0
    %342 = vmatpush.msra.mxu0 0.0
    %343 = vmatpush.msra.mxu0 0.0
    %344 = vmatpush.msra.mxu0 0.0
    %345 = vmatpush.msra.mxu0 0.0
    %346 = vmatpush.msra.mxu0 0.0
    %347 = vmatpush.msra.mxu0 0.0
    %348 = vmatpush.msra.mxu0 0.0
    %349 = vmatpush.msra.mxu0 %v221
    %350 = vmatmul.f32.gmra.mxu0 %v332
    %v351 = vpop.f32.mrf.mxu0
    %v352 = vadd.f32 0.0, %v351
    %353 = vdwg.mxu0
    %v355 = vsel %vm285, %v315, 0
    %357 = vmatpush.msra.mxu0 0.0
    %358 = vmatpush.msra.mxu0 0.0
    %359 = vmatpush.msra.mxu0 0.0
    %360 = vmatpush.msra.mxu0 0.0
    %361 = vmatpush.msra.mxu0 0.0
    %362 = vmatpush.msra.mxu0 0.0
    %363 = vmatpush.msra.mxu0 0.0
    %364 = vmatpush.msra.mxu0 0.0
    %365 = vmatpush.msra.mxu0 0.0
    %366 = vmatpush.msra.mxu0 0.0
    %367 = vmatpush.msra.mxu0 0.0
    %368 = vmatpush.msra.mxu0 0.0
    %369 = vmatpush.msra.mxu0 0.0
    %370 = vmatpush.msra.mxu0 0.0
    %371 = vmatpush.msra.mxu0 0.0
    %372 = vmatpush.msra.mxu0 %v224
    %373 = vmatmul.f32.gmra.mxu0 %v355
    %v374 = vpop.f32.mrf.mxu0
    %v375 = vadd.f32 0.0, %v374
    %376 = vdwg.mxu0
    %v377 = vld [vmem:[#allocation5] sm:$0xff]
    %v378 = vld [vmem:[#allocation5 + $0x8] sm:$0xff]
    %380 = vset.pattern.permute.xlu0 0
    %381 = vperm.xlu0 %380, %v297
    %v382 = vpop.permute.xlu0 %381
    %385 = vset.pattern.permute.xlu0 0
    %386 = vperm.xlu0 %385, %v299
    %v387 = vpop.permute.xlu0 %386
    %v389 = vmul.f32 %v382, %v377
    %v390 = vmul.f32 %v387, %v378
    %v391 = vadd.f32 %v389, %v352
    %v392 = vadd.f32 %v390, %v375
    %393 = vst.msk [vmem:[#allocation5] sm:$0xff] %vm228, %v391
    %394 = vst.msk [vmem:[#allocation5 + $0x8] sm:$0xff] %vm228, %v392
    %v395 = vld [vmem:[#allocation2] sm:$0xff]
    %v396 = vld [vmem:[#allocation2 + $0x8] sm:$0xff]
    %398 = vrot.lane.b32.xlu0 %v395, 112
    %v399 = vpop.permute.xlu0 %398
    %400 = vrot.lane.b32.xlu0 %v192, 112
    %v401 = vpop.permute.xlu0 %400
    %v402 = vsel %vm228, %v399, 0
    %v404 = vsel %vm228, %v401, 0
    %406 = vmatpush.xpose.msra.mxu0 0.0
    %407 = vmatpush.xpose.msra.mxu0 0.0
    %408 = vmatpush.xpose.msra.mxu0 0.0
    %409 = vmatpush.xpose.msra.mxu0 0.0
    %410 = vmatpush.xpose.msra.mxu0 0.0
    %411 = vmatpush.xpose.msra.mxu0 0.0
    %412 = vmatpush.xpose.msra.mxu0 0.0
    %413 = vmatpush.xpose.msra.mxu0 0.0
    %414 = vmatpush.xpose.msra.mxu0 0.0
    %415 = vmatpush.xpose.msra.mxu0 0.0
    %416 = vmatpush.xpose.msra.mxu0 0.0
    %417 = vmatpush.xpose.msra.mxu0 0.0
    %418 = vmatpush.xpose.msra.mxu0 0.0
    %419 = vmatpush.xpose.msra.mxu0 0.0
    %420 = vmatpush.xpose.msra.mxu0 0.0
    %421 = vmatpush.xpose.msra.mxu0 %v404
    %422 = vmatmul.f32.gmra.mxu0 %v402
    %v423 = vpop.f32.mrf.mxu0
    %v424 = vadd.f32 0.0, %v423
    %425 = vdwg.mxu0
    %427 = vrot.lane.b32.xlu0 %v396, 112
    %v428 = vpop.permute.xlu0 %427
    %429 = vrot.lane.b32.xlu0 %v195, 112
    %v430 = vpop.permute.xlu0 %429
    %v431 = vsel %vm228, %v428, 0
    %v433 = vsel %vm228, %v430, 0
    %435 = vmatpush.xpose.msra.mxu0 0.0
    %436 = vmatpush.xpose.msra.mxu0 0.0
    %437 = vmatpush.xpose.msra.mxu0 0.0
    %438 = vmatpush.xpose.msra.mxu0 0.0
    %439 = vmatpush.xpose.msra.mxu0 0.0
    %440 = vmatpush.xpose.msra.mxu0 0.0
    %441 = vmatpush.xpose.msra.mxu0 0.0
    %442 = vmatpush.xpose.msra.mxu0 0.0
    %443 = vmatpush.xpose.msra.mxu0 0.0
    %444 = vmatpush.xpose.msra.mxu0 0.0
    %445 = vmatpush.xpose.msra.mxu0 0.0
    %446 = vmatpush.xpose.msra.mxu0 0.0
    %447 = vmatpush.xpose.msra.mxu0 0.0
    %448 = vmatpush.xpose.msra.mxu0 0.0
    %449 = vmatpush.xpose.msra.mxu0 0.0
    %450 = vmatpush.xpose.msra.mxu0 %v433
    %451 = vmatmul.f32.gmra.mxu0 %v431
    %v452 = vpop.f32.mrf.mxu0
    %v453 = vadd.f32 0.0, %v452
    %454 = vdwg.mxu0
    %v455 = vld [vmem:[#allocation3] sm:$0xff]
    %v456 = vld [vmem:[#allocation3 + $0x8] sm:$0xff]
    %v457 = vld [vmem:[#allocation4] sm:$0xff]
    %v458 = vld [vmem:[#allocation4 + $0x8] sm:$0xff]
    %v459 = vsel %vm285, %v424, -inf
    %460 = vmax.xlane.f32.xlu0 %v459
    %v461 = vpop.xlane.xlu0 %460
    %v462 = vsel %vm285, %v453, -inf
    %463 = vmax.xlane.f32.xlu0 %v462
    %v464 = vpop.xlane.xlu0 %463
    %v465 = vmax.f32 %v455, %v461
    %v466 = vmax.f32 %v456, %v464
    %v467 = vsub.f32 %v455, %v465
    %v468 = vsub.f32 %v456, %v466
    %v469 = vmul.f32 %v467, 1.442695
    %v470 = vpow.pop %v469
    %v471 = vmul.f32 %v468, 1.442695
    %v472 = vpow.pop %v471
    %474 = vset.pattern.permute.xlu0 1
    %475 = vperm.xlu0 %474, %v465
    %v476 = vpop.permute.xlu0 %475
    %479 = vset.pattern.permute.xlu0 1
    %480 = vperm.xlu0 %479, %v466
    %v481 = vpop.permute.xlu0 %480
    %v483 = vsub.f32 %v424, %v476
    %v484 = vsub.f32 %v453, %v481
    %v485 = vmul.f32 %v483, 1.442695
    %v486 = vpow.pop %v485
    %v487 = vmul.f32 %v484, 1.442695
    %v488 = vpow.pop %v487
    %v489 = vmul.f32 %v470, %v457
    %v490 = vmul.f32 %v472, %v458
    %v491 = vsel %vm285, %v486, 0.0
    %492 = vadd.xlane.f32.xlu0 %v491
    %v493 = vpop.xlane.xlu0 %492
    %v494 = vsel %vm285, %v488, 0.0
    %495 = vadd.xlane.f32.xlu0 %v494
    %v496 = vpop.xlane.xlu0 %495
    %v497 = vadd.f32 %v489, %v493
    %v498 = vadd.f32 %v490, %v496
    %vm499 = vcmask 15368
    %500 = vst.msk [vmem:[#allocation4] sm:$0xff] %vm499, %v497
    %501 = vst.msk [vmem:[#allocation4 + $0x8] sm:$0xff] %vm499, %v498
    %502 = vst.msk [vmem:[#allocation3] sm:$0xff] %vm499, %v465
    %503 = vst.msk [vmem:[#allocation3 + $0x8] sm:$0xff] %vm499, %v466
    %505 = vrot.lane.b32.xlu0 %v221, 112
    %v506 = vpop.permute.xlu0 %505
    %v509 = vsel %vm285, %v486, 0
    %511 = vmatpush.msra.mxu0 0.0
    %512 = vmatpush.msra.mxu0 0.0
    %513 = vmatpush.msra.mxu0 0.0
    %514 = vmatpush.msra.mxu0 0.0
    %515 = vmatpush.msra.mxu0 0.0
    %516 = vmatpush.msra.mxu0 0.0
    %517 = vmatpush.msra.mxu0 0.0
    %518 = vmatpush.msra.mxu0 0.0
    %519 = vmatpush.msra.mxu0 0.0
    %520 = vmatpush.msra.mxu0 0.0
    %521 = vmatpush.msra.mxu0 0.0
    %522 = vmatpush.msra.mxu0 0.0
    %523 = vmatpush.msra.mxu0 0.0
    %524 = vmatpush.msra.mxu0 0.0
    %525 = vmatpush.msra.mxu0 0.0
    %526 = vmatpush.msra.mxu0 %v506
    %527 = vmatmul.f32.gmra.mxu0 %v509
    %v528 = vpop.f32.mrf.mxu0
    %v529 = vadd.f32 0.0, %v528
    %530 = vdwg.mxu0
    %532 = vrot.lane.b32.xlu0 %v224, 112
    %v533 = vpop.permute.xlu0 %532
    %v536 = vsel %vm285, %v488, 0
    %538 = vmatpush.msra.mxu0 0.0
    %539 = vmatpush.msra.mxu0 0.0
    %540 = vmatpush.msra.mxu0 0.0
    %541 = vmatpush.msra.mxu0 0.0
    %542 = vmatpush.msra.mxu0 0.0
    %543 = vmatpush.msra.mxu0 0.0
    %544 = vmatpush.msra.mxu0 0.0
    %545 = vmatpush.msra.mxu0 0.0
    %546 = vmatpush.msra.mxu0 0.0
    %547 = vmatpush.msra.mxu0 0.0
    %548 = vmatpush.msra.mxu0 0.0
    %549 = vmatpush.msra.mxu0 0.0
    %550 = vmatpush.msra.mxu0 0.0
    %551 = vmatpush.msra.mxu0 0.0
    %552 = vmatpush.msra.mxu0 0.0
    %553 = vmatpush.msra.mxu0 %v533
    %554 = vmatmul.f32.gmra.mxu0 %v536
    %v555 = vpop.f32.mrf.mxu0
    %v556 = vadd.f32 0.0, %v555
    %557 = vdwg.mxu0
    %v558 = vld [vmem:[#allocation5] sm:$0xff]
    %v559 = vld [vmem:[#allocation5 + $0x8] sm:$0xff]
    %561 = vset.pattern.permute.xlu0 1
    %562 = vperm.xlu0 %561, %v470
    %v563 = vpop.permute.xlu0 %562
    %566 = vset.pattern.permute.xlu0 1
    %567 = vperm.xlu0 %566, %v472
    %v568 = vpop.permute.xlu0 %567
    %v570 = vmul.f32 %v563, %v558
    %v571 = vmul.f32 %v568, %v559
    %574 = vrot.lane.b32.xlu0 %v529, 16
    %v575 = vpop.permute.xlu0 %574
    %576 = vrot.lane.b32.xlu0 %v556, 16
    %v577 = vpop.permute.xlu0 %576
    %v580 = vadd.f32 %v570, %v575
    %v581 = vadd.f32 %v571, %v577
    %vm582 = vcmask 261248
    %583 = vst.msk [vmem:[#allocation5] sm:$0xff] %vm582, %v580
    %584 = vst.msk [vmem:[#allocation5 + $0x8] sm:$0xff] %vm582, %v581
    // Predicated region
    $region50: #{tpu_custom_call.1} parent=1 // pred_check
      %p585 = pneg %p112
    $region51: #{tpu_custom_call.1} parent=1 // pred_check_branch
      %587 = sbr.rel (%p585) target = $region53
    $region52: #{tpu_custom_call.1} parent=1 // pred_region
      %v588 = vld [vmem:[#allocation4] sm:$0xff]
      %v589 = vld [vmem:[#allocation4 + $0x8] sm:$0xff]
      %v590 = vrcp.pop %v588
      %v591 = vrcp.pop %v589
      %v592 = vld [vmem:[#allocation5] sm:$0xff]
      %v593 = vld [vmem:[#allocation5 + $0x8] sm:$0xff]
      %595 = vset.pattern.permute.xlu0 0
      %596 = vperm.xlu0 %595, %v590
      %v597 = vpop.permute.xlu0 %596
      %600 = vset.pattern.permute.xlu0 0
      %601 = vperm.xlu0 %600, %v591
      %v602 = vpop.permute.xlu0 %601
      %v604 = vmul.f32 %v592, %v597
      %v605 = vmul.f32 %v593, %v602
      %606 = vst.msk [vmem:[#allocation5] sm:$0xff] %vm228, %v604
      %607 = vst.msk [vmem:[#allocation5 + $0x8] sm:$0xff] %vm228, %v605
      %v608 = vld [vmem:[#allocation5] sm:$0xff]
      %v609 = vld [vmem:[#allocation5 + $0x8] sm:$0xff]
      %610 = vset.pattern.permute.xlu0 1
      %611 = vperm.xlu0 %610, %v590
      %v612 = vpop.permute.xlu0 %611
      %614 = vset.pattern.permute.xlu0 1
      %615 = vperm.xlu0 %614, %v591
      %v616 = vpop.permute.xlu0 %615
      %v618 = vmul.f32 %v608, %v612
      %v619 = vmul.f32 %v609, %v616
      %620 = vst.msk [vmem:[#allocation5] sm:$0xff] %vm582, %v618
      %621 = vst.msk [vmem:[#allocation5 + $0x8] sm:$0xff] %vm582, %v619
      %v622 = vld [vmem:[#allocation5] sm:$0xff]
      %v623 = vld [vmem:[#allocation5 + $0x8] sm:$0xff]
      %v624 = vld [vmem:[#allocation14] sm:$0xff]
      %v625 = vld [vmem:[#allocation14 + $0x8] sm:$0xff]
      %v626 = vld [vmem:[#allocation14 + $0x10] sm:$0xff]
      %v627 = vld [vmem:[#allocation14 + $0x18] sm:$0xff]
      %v628 = vld [vmem:[%s5] sm:$0x1]
      %v630 = vperm.slane %v628, 0
      %v633 = vsel %vm167, %v622, 0
      %v636 = vsel %vm167, %v623, 0
      %638 = vmatpush.msra.mxu0 0.0
      %639 = vmatpush.msra.mxu0 0.0
      %640 = vmatpush.msra.mxu0 0.0
      %641 = vmatpush.msra.mxu0 0.0
      %642 = vmatpush.msra.mxu0 0.0
      %643 = vmatpush.msra.mxu0 0.0
      %644 = vmatpush.msra.mxu0 0.0
      %645 = vmatpush.msra.mxu0 0.0
      %646 = vmatpush.msra.mxu0 0.0
      %647 = vmatpush.msra.mxu0 0.0
      %648 = vmatpush.msra.mxu0 0.0
      %649 = vmatpush.msra.mxu0 0.0
      %650 = vmatpush.msra.mxu0 %v627
      %651 = vmatpush.msra.mxu0 %v626
      %652 = vmatpush.msra.mxu0 %v625
      %653 = vmatpush.msra.mxu0 %v624
      %654 = vmatmul.f32.gmra.mxu0 %v633
      %v655 = vpop.f32.mrf.mxu0
      %v656 = vadd.f32 %v630, %v655
      %657 = vmatmul.f32.gmra.mxu0 %v636
      %v658 = vpop.f32.mrf.mxu0
      %v659 = vadd.f32 %v630, %v658
      %660 = vdwg.mxu0
      %661 = vst.msk [vmem:[#allocation15] sm:$0xff] %vm167, %v656
      %662 = vst.msk [vmem:[#allocation15 + $0x8] sm:$0xff] %vm167, %v659
    $region53: #{tpu_custom_call.1} parent=1 // pred_fallthru
      _
    // Predicated region
    $region54: #{tpu_custom_call.1} parent=1 // pred_check
      _
    $region55: #{tpu_custom_call.1} parent=1 // pred_check_branch
      %664 = sbr.rel (0) target = $region57
    $region56: #{tpu_custom_call.1} parent=1 // pred_region
      %666 = vsyncadd [#allocation8], 0
      %s667 = sshll.u32 [#allocation15], 4
      %s668 = int_to_ptr.vmem [resolvable:$true] %s667
      %s669 = sshll.u32 %s6, 4
      %s670 = int_to_ptr.hbm [resolvable:$true] %s669
      %675 = dma.vmem_to_hbm [thread:$0]  %s668, 256, %s670, [#allocation8], 128, 128, 8
    $region57: #{tpu_custom_call.1} parent=1 // pred_fallthru
      _
    // Predicated region
    $region58: #{tpu_custom_call.1} parent=1 // pred_check
      _
    $region59: #{tpu_custom_call.1} parent=1 // pred_check_branch
      %677 = sbr.rel (0) target = $region61
    $region60: #{tpu_custom_call.1} parent=1 // pred_region
      %679 = dma.done [#allocation8], 256
    $region61: #{tpu_custom_call.1} parent=1 // pred_fallthru
      _
    %680 = vsyncpa [#allocation7], 1
    %681 = vsyncpa [#allocation10], 1
    %682 = vsyncpa [#allocation13], 1
    %683 = vsyncpa [#allocation8], 1

</llo_original>
